<compile_context>
chip_gen: v7x
topology: tpu7x:2x2x1
jax: 0.10.0
libtpu: 0.0.40
codegen_flags: <defaults>
</compile_context>

<pallas_src>
import functools

import jax
import jax.numpy as jnp
from jax import lax
from jax.experimental import pallas as pl
from jax.experimental.pallas import tpu as pltpu


def _pick_row_tile(Ho, N, candidates=(256, 128, 64, 32, 16, 8)):
    """Largest sublane-aligned row tile dividing Ho padded up to a multiple of 8.
    When N == 1, caps the tile so at least 2 parallel grid steps exist (v7x)."""
    Ho_pad = -(-Ho // 8) * 8
    tile = 8
    for c in candidates:
        if Ho_pad % c == 0:
            tile = c
            break
    if N == 1:
        while tile > 8 and Ho_pad // tile < 2:
            tile //= 2
    return tile, Ho_pad


def _vmem_limit_bytes(block_bytes):
    """Scoped-VMEM budget from the actual (double-buffered) block sizes, with
    headroom, capped at ~75% of the chip's physical VMEM."""
    need = 2 * sum(int(b) for b in block_bytes) + (8 << 20)
    try:
        cap = int(pltpu.get_tpu_info().vmem_capacity_bytes)
    except Exception:          # conservative default == v7x per-core VMEM
        cap = 64 << 20
    return int(min(max(need, 32 << 20), (cap * 3) // 4))


def _conv_tile(x_ref, m_ref, row0, *, tile_h, ksize, dilation, WoOC):
    """Fused depthwise + pointwise conv for one row tile.

    x_ref: (1, Hp_pad, Wp*C)   padded input, lanes = w*C + c
    m_ref: (K, Wp*C, Wo*outC)  per-kh fused (depthwise x pointwise) MXU operands
    Returns z: (tile_h, Wo*outC) float32, lane-dense (lanes = w*outC + o).
    """
    z = jnp.zeros((tile_h, WoOC), jnp.float32)
    for kh in range(ksize):
        rows = x_ref[0, pl.ds(row0 + kh * dilation, tile_h), :].astype(jnp.float32)
        # TODO(synk): cast rows / m_ref[kh] to bf16 (keep f32 accumulation) once
        # the conv is MXU-bound at larger C*Wp; kept f32 here for precision.
        z = z + jnp.dot(rows, m_ref[kh], preferred_element_type=jnp.float32)
    return z


def _conv_stats_kernel(x_ref, m_ref, stats_ref, *, tile_h, ksize, dilation,
                       WoOC, Ho, Ho_pad):
    """Pass 1: fused conv -> per-image BN partial [sum; sum of squares].

    The stats output block index depends only on n, so it stays resident in
    VMEM across the (arbitrary) t axis and is accumulated in place (P3)."""
    t = pl.program_id(1)
    row0 = pl.multiple_of(t * tile_h, tile_h)
    z = _conv_tile(x_ref, m_ref, row0, tile_h=tile_h, ksize=ksize,
                   dilation=dilation, WoOC=WoOC)

    if Ho_pad != Ho:  # static: mask padded tail rows out of the statistics
        rid = row0 + lax.broadcasted_iota(jnp.int32, (tile_h, 1), 0)
        z = jnp.where(rid < Ho, z, 0.0)

    # TODO(synk): plain f32 sum / sum-of-squares can cancel for large-mean
    # activations; switch to per-tile-centered (Chan) accumulation if needed.
    part = jnp.concatenate([jnp.sum(z, axis=0, keepdims=True),
                            jnp.sum(z * z, axis=0, keepdims=True)], axis=0)

    @pl.when(t == 0)
    def _():
        stats_ref[...] = jnp.zeros_like(stats_ref)

    stats_ref[0, :, :] += part


def _conv_bn_relu_kernel(x_ref, m_ref, scale_ref, shift_ref, o_ref, *,
                         tile_h, ksize, dilation, WoOC):
    """Pass 2: recompute conv, then y = relu(z * scale + shift) (lane-dense)."""
    t = pl.program_id(1)
    row0 = pl.multiple_of(t * tile_h, tile_h)
    z = _conv_tile(x_ref, m_ref, row0, tile_h=tile_h, ksize=ksize,
                   dilation=dilation, WoOC=WoOC)
    y = z * scale_ref[...] + shift_ref[...]
    o_ref[0, :, :] = jnp.maximum(y, 0.0).astype(o_ref.dtype)


def conv2d_separable_basicblock(x_nchw, w_dw, w_pw, gamma, beta, *, ksize,
                                padding=0, dilation=1, drop_val=0, eps=1e-5):
    """PyTorch-equivalent forward.

    x_nchw: (N, C, H, W); w_dw: (C, 1, K, K) depthwise (groups=C, no bias);
    w_pw: (outC, C, 1, 1) pointwise (no bias); gamma/beta: (outC,).
    Returns (N, outC, Ho, Wo)."""
    N, C, H, W = x_nchw.shape
    outC = w_pw.shape[0]
    K = ksize
    halo = dilation * (K - 1)
    Hp, Wp = H + 2 * padding, W + 2 * padding
    Ho, Wo = Hp - halo, Wp - halo
    WpC, WoOC = Wp * C, Wo * outC

    tile_h, Ho_pad = _pick_row_tile(Ho, N)
    n_h = Ho_pad // tile_h
    Hp_pad = Ho_pad + halo

    # ---- layout glue (NCHW -> NHWC -> (N, Hp_pad, Wp*C)) ---------------------
    # TODO(synk): these boundary transposes/pad are plain XLA ops (a full HBM
    # round trip each); feed/keep NHWC end-to-end in the surrounding model to
    # drop them — the largest remaining end-to-end win at mem-bound sizes.
    x = jnp.transpose(x_nchw, (0, 2, 3, 1)).astype(jnp.float32)
    x = jnp.pad(x, ((0, 0), (padding, padding + (Hp_pad - Hp)),
                    (padding, padding), (0, 0)))
    x = x.reshape(N, Hp_pad, WpC)

    # ---- fused depthwise+pointwise MXU operands, one per kh ------------------
    # M[kh, wi*C+c, wo*outC+o] = sum_kw [wi == wo+kw*d] * wd[c,kh,kw] * wp[o,c]
    # TODO(synk): this lane-dense fused operand grows O(K*Wp*C*Wo*outC); for
    # Wo*outC >> 512 switch to a dense (C,outC) pointwise matmul + repack.
    wd = w_dw[:, 0].astype(jnp.float32)                                  # (C,K,K)
    wpT = jnp.transpose(w_pw[:, :, 0, 0], (1, 0)).astype(jnp.float32)    # (C,outC)
    wi = jnp.arange(Wp)[:, None, None]
    wo = jnp.arange(Wo)[None, :, None]
    kw = jnp.arange(K)[None, None, :]
    ind = (wi == wo + kw * dilation).astype(jnp.float32)                 # (Wp,Wo,K)
    m_fused = jnp.einsum('pwk,chk,co->hpcwo', ind, wd, wpT)
    m_fused = m_fused.reshape(K, WpC, WoOC)

    # ---- VMEM budget from the actual block sizes -----------------------------
    vmem_limit = _vmem_limit_bytes([
        Hp_pad * WpC * 4,        # x block (fetched once per n)
        K * WpC * WoOC * 4,      # fused conv operand
        tile_h * WoOC * 4,       # output tile / in-flight z
        2 * WoOC * 4,            # stats block
        2 * WoOC * 4,            # scale + shift
    ])

    conv_kw = dict(tile_h=tile_h, ksize=K, dilation=dilation, WoOC=WoOC)

    # ---- pass 1: fused conv -> per-image BN partial sums (no z writeback) ----
    # TODO(synk): for very large Hp*Wp*C, replace the whole-image-per-n input
    # block with a halo'd row-tile fetch (pl.Element offsets / manual
    # make_async_copy) to bound per-step VMEM on v7x, and single-buffer the
    # grid-invariant m_fused / scale / shift (pipeline_mode=pl.Buffered(1)).
    stats = pl.pallas_call(
        functools.partial(_conv_stats_kernel, Ho=Ho, Ho_pad=Ho_pad, **conv_kw),
        out_shape=jax.ShapeDtypeStruct((N, 2, WoOC), jnp.float32),
        grid=(N, n_h),
        in_specs=[
            pl.BlockSpec((1, Hp_pad, WpC), lambda n, t: (n, 0, 0)),
            pl.BlockSpec((K, WpC, WoOC), lambda n, t: (0, 0, 0)),
        ],
        out_specs=pl.BlockSpec((1, 2, WoOC), lambda n, t: (n, 0, 0)),
        compiler_params=pltpu.CompilerParams(
            dimension_semantics=("parallel", "arbitrary"),
            vmem_limit_bytes=vmem_limit),
    )(x, m_fused)

    # ---- tiny global BN reduction + affine prep (O(outC), plain JAX glue) ----
    cnt = jnp.float32(N * Ho * Wo)
    stats = stats.reshape(N, 2, Wo, outC)
    s1 = jnp.sum(stats[:, 0], axis=(0, 1))
    s2 = jnp.sum(stats[:, 1], axis=(0, 1))
    mean = s1 / cnt
    var = jnp.maximum(s2 / cnt - mean * mean, 0.0)   # biased var (BN training mode)
    scale = gamma.astype(jnp.float32) * lax.rsqrt(var + eps)
    shift = beta.astype(jnp.float32) - mean * scale
    scale_l = jnp.tile(scale, Wo).reshape(1, WoOC)   # per-channel -> lane layout
    shift_l = jnp.tile(shift, Wo).reshape(1, WoOC)

    # ---- pass 2: recompute conv + normalize + affine + ReLU ------------------
    out = pl.pallas_call(
        functools.partial(_conv_bn_relu_kernel, **conv_kw),
        out_shape=jax.ShapeDtypeStruct((N, Ho_pad, WoOC), x_nchw.dtype),
        grid=(N, n_h),
        in_specs=[
            pl.BlockSpec((1, Hp_pad, WpC), lambda n, t: (n, 0, 0)),
            pl.BlockSpec((K, WpC, WoOC), lambda n, t: (0, 0, 0)),
            pl.BlockSpec((1, WoOC), lambda n, t: (0, 0)),
            pl.BlockSpec((1, WoOC), lambda n, t: (0, 0)),
        ],
        out_specs=pl.BlockSpec((1, tile_h, WoOC), lambda n, t: (n, t, 0)),
        compiler_params=pltpu.CompilerParams(
            dimension_semantics=("parallel", "parallel"),
            vmem_limit_bytes=vmem_limit),
    )(x, m_fused, scale_l, shift_l)

    # TODO(synk): nn.Dropout skipped because drop_val == 0 (the PyTorch forward
    # only applies it when drop_val != 0); a nonzero-drop path would use
    # pltpu.prng_seed / pltpu.prng_random_bits inside pass 2.
    del drop_val

    out = out[:, :Ho, :].reshape(N, Ho, Wo, outC)
    return jnp.transpose(out, (0, 3, 1, 2))      # -> NCHW


def _reference(x, w_dw, w_pw, gamma, beta, *, ksize, padding, dilation, eps=1e-5):
    """Pure-JAX reference matching the PyTorch forward (training-mode BN)."""
    dw = lax.conv_general_dilated(
        x, w_dw, window_strides=(1, 1),
        padding=[(padding, padding), (padding, padding)],
        rhs_dilation=(dilation, dilation),
        dimension_numbers=('NCHW', 'OIHW', 'NCHW'),
        feature_group_count=x.shape[1])
    pw = lax.conv_general_dilated(
        dw, w_pw, window_strides=(1, 1), padding='VALID',
        dimension_numbers=('NCHW', 'OIHW', 'NCHW'))
    mean = pw.mean(axis=(0, 2, 3), keepdims=True)
    var = ((pw - mean) ** 2).mean(axis=(0, 2, 3), keepdims=True)
    y = (pw - mean) / jnp.sqrt(var + eps)
    y = y * gamma.reshape(1, -1, 1, 1) + beta.reshape(1, -1, 1, 1)
    return jnp.maximum(y, 0.0)


if __name__ == "__main__":
    # Module config: Conv2d_Seperable_BasicBlock(inC=4, outC=8, ksize=3,
    #                                            padding=1, dilation=1, drop_val=0)
    N, inC, outC, H, W = 2, 4, 8, 16, 16
    ksize, padding, dilation = 3, 1, 1

    key = jax.random.PRNGKey(0)
    kx, kdw, kpw = jax.random.split(key, 3)

    x = jax.random.normal(kx, (N, inC, H, W), dtype=jnp.float32)
    w_dw = 0.3 * jax.random.normal(kdw, (inC, 1, ksize, ksize), dtype=jnp.float32)
    w_pw = 0.3 * jax.random.normal(kpw, (outC, inC, 1, 1), dtype=jnp.float32)
    gamma = jnp.ones((outC,), dtype=jnp.float32)   # BatchNorm2d default init
    beta = jnp.zeros((outC,), dtype=jnp.float32)

    out = conv2d_separable_basicblock(
        x, w_dw, w_pw, gamma, beta,
        ksize=ksize, padding=padding, dilation=dilation, drop_val=0)
    out = jax.block_until_ready(out)

    ref = _reference(x, w_dw, w_pw, gamma, beta,
                     ksize=ksize, padding=padding, dilation=dilation)
    assert out.shape == (N, outC, H, W), out.shape
    assert jnp.allclose(out, ref, rtol=1e-3, atol=1e-3), \
        float(jnp.max(jnp.abs(out - ref)))

    print("KERNEL_OK")
</pallas_src>

<mosaic_0001>
module attributes {stable_mosaic.version = 11 : i64} {
  func.func @_conv_stats_kernel(%arg0: i32, %arg1: i32, %arg2: memref<1x18x72xf32, #tpu.memory_space<vmem>>, %arg3: memref<3x72x128xf32, #tpu.memory_space<vmem>>, %arg4: memref<1x2x128xf32, #tpu.memory_space<vmem>>) attributes {dimension_semantics = [#tpu.dimension_semantics<parallel>, #tpu.dimension_semantics<arbitrary>], iteration_bounds = array<i64: 2, 1>, scalar_prefetch = 0 : i64, scratch_operands = 0 : i64, tpu.core_type = #tpu.core_type<tc>, window_params = [{transform_indices = @transform_0, window_bounds = array<i64: 1, 18, 72>}, {pipeline_mode = #tpu.pipeline_mode<synchronous>, transform_indices = @transform_1, window_bounds = array<i64: 3, 72, 128>}, {transform_indices = @transform_2, window_bounds = array<i64: 1, 2, 128>}]} {
    %c16_i32 = arith.constant 16 : i32
    %0 = arith.muli %arg1, %c16_i32 : i32
    %1 = tpu.assume_multiple %0, 16 : i32
    %cst = arith.constant 0.000000e+00 : f32
    %2 = vector.broadcast %cst : f32 to vector<16x128xf32>
    %c0_i32 = arith.constant 0 : i32
    %3 = arith.addi %1, %c0_i32 : i32
    %c0 = arith.constant 0 : index
    %4 = arith.index_cast %3 : i32 to index
    %c0_0 = arith.constant 0 : index
    %5 = vector.load %arg2[%c0, %4, %c0_0] : memref<1x18x72xf32, #tpu.memory_space<vmem>>, vector<1x16x72xf32>
    %6 = vector.shape_cast %5 : vector<1x16x72xf32> to vector<16x72xf32>
    %c0_1 = arith.constant 0 : index
    %c0_2 = arith.constant 0 : index
    %c0_3 = arith.constant 0 : index
    %7 = vector.load %arg3[%c0_1, %c0_2, %c0_3] : memref<3x72x128xf32, #tpu.memory_space<vmem>>, vector<1x72x128xf32>
    %8 = vector.shape_cast %7 : vector<1x72x128xf32> to vector<72x128xf32>
    %cst_4 = arith.constant dense<0.000000e+00> : vector<16x128xf32>
    %9 = tpu.matmul %6, %8, %cst_4 {dimension_numbers = #tpu.dot_dimension_numbers<[1], [0], [0], [1], [0, 0, 1, 1], [], []>} : vector<16x72xf32>, vector<72x128xf32>, vector<16x128xf32> -> vector<16x128xf32>
    %10 = arith.addf %2, %9 : vector<16x128xf32>
    %c1_i32 = arith.constant 1 : i32
    %11 = arith.addi %1, %c1_i32 : i32
    %c0_5 = arith.constant 0 : index
    %12 = arith.index_cast %11 : i32 to index
    %c0_6 = arith.constant 0 : index
    %13 = vector.load %arg2[%c0_5, %12, %c0_6] : memref<1x18x72xf32, #tpu.memory_space<vmem>>, vector<1x16x72xf32>
    %14 = vector.shape_cast %13 : vector<1x16x72xf32> to vector<16x72xf32>
    %c1 = arith.constant 1 : index
    %c0_7 = arith.constant 0 : index
    %c0_8 = arith.constant 0 : index
    %15 = vector.load %arg3[%c1, %c0_7, %c0_8] : memref<3x72x128xf32, #tpu.memory_space<vmem>>, vector<1x72x128xf32>
    %16 = vector.shape_cast %15 : vector<1x72x128xf32> to vector<72x128xf32>
    %cst_9 = arith.constant dense<0.000000e+00> : vector<16x128xf32>
    %17 = tpu.matmul %14, %16, %cst_9 {dimension_numbers = #tpu.dot_dimension_numbers<[1], [0], [0], [1], [0, 0, 1, 1], [], []>} : vector<16x72xf32>, vector<72x128xf32>, vector<16x128xf32> -> vector<16x128xf32>
    %18 = arith.addf %10, %17 : vector<16x128xf32>
    %c2_i32 = arith.constant 2 : i32
    %19 = arith.addi %1, %c2_i32 : i32
    %c0_10 = arith.constant 0 : index
    %20 = arith.index_cast %19 : i32 to index
    %c0_11 = arith.constant 0 : index
    %21 = vector.load %arg2[%c0_10, %20, %c0_11] : memref<1x18x72xf32, #tpu.memory_space<vmem>>, vector<1x16x72xf32>
    %22 = vector.shape_cast %21 : vector<1x16x72xf32> to vector<16x72xf32>
    %c2 = arith.constant 2 : index
    %c0_12 = arith.constant 0 : index
    %c0_13 = arith.constant 0 : index
    %23 = vector.load %arg3[%c2, %c0_12, %c0_13] : memref<3x72x128xf32, #tpu.memory_space<vmem>>, vector<1x72x128xf32>
    %24 = vector.shape_cast %23 : vector<1x72x128xf32> to vector<72x128xf32>
    %cst_14 = arith.constant dense<0.000000e+00> : vector<16x128xf32>
    %25 = tpu.matmul %22, %24, %cst_14 {dimension_numbers = #tpu.dot_dimension_numbers<[1], [0], [0], [1], [0, 0, 1, 1], [], []>} : vector<16x72xf32>, vector<72x128xf32>, vector<16x128xf32> -> vector<16x128xf32>
    %26 = arith.addf %18, %25 : vector<16x128xf32>
    %cst_15 = arith.constant dense<0.000000e+00> : vector<128xf32>
    %27 = vector.multi_reduction <add>, %26, %cst_15 [0] : vector<16x128xf32> to vector<128xf32>
    %28 = vector.shape_cast %27 : vector<128xf32> to vector<1x128xf32>
    %29 = arith.mulf %26, %26 : vector<16x128xf32>
    %cst_16 = arith.constant dense<0.000000e+00> : vector<128xf32>
    %30 = vector.multi_reduction <add>, %29, %cst_16 [0] : vector<16x128xf32> to vector<128xf32>
    %31 = vector.shape_cast %30 : vector<128xf32> to vector<1x128xf32>
    %32 = tpu.concatenate %28, %31 in 0 : vector<1x128xf32>, vector<1x128xf32> -> vector<2x128xf32>
    %c0_i32_17 = arith.constant 0 : i32
    %33 = arith.cmpi eq, %arg1, %c0_i32_17 : i32
    %34 = arith.extui %33 : i1 to i32
    %c0_i32_18 = arith.constant 0 : i32
    %35 = arith.cmpi ne, %34, %c0_i32_18 : i32
    scf.if %35 {
      %cst_25 = arith.constant 0.000000e+00 : f32
      %42 = vector.broadcast %cst_25 : f32 to vector<1x2x128xf32>
      %c0_26 = arith.constant 0 : index
      %c0_27 = arith.constant 0 : index
      %c0_28 = arith.constant 0 : index
      %43 = vector.load %arg4[%c0_26, %c0_27, %c0_28] : memref<1x2x128xf32, #tpu.memory_space<vmem>>, vector<1x2x128xf32>
      tpu.vector_store %arg4[%c0_26, %c0_27, %c0_28], %42 {strides = array<i32>} : memref<1x2x128xf32, #tpu.memory_space<vmem>>, vector<1x2x128xf32>,
    } else {
    }
    %c0_19 = arith.constant 0 : index
    %c0_20 = arith.constant 0 : index
    %c0_21 = arith.constant 0 : index
    %36 = vector.load %arg4[%c0_19, %c0_20, %c0_21] : memref<1x2x128xf32, #tpu.memory_space<vmem>>, vector<1x2x128xf32>
    %37 = vector.shape_cast %36 : vector<1x2x128xf32> to vector<2x128xf32>
    %38 = arith.addf %37, %32 : vector<2x128xf32>
    %c0_22 = arith.constant 0 : index
    %c0_23 = arith.constant 0 : index
    %c0_24 = arith.constant 0 : index
    %39 = vector.load %arg4[%c0_22, %c0_23, %c0_24] : memref<1x2x128xf32, #tpu.memory_space<vmem>>, vector<1x2x128xf32>
    %40 = vector.shape_cast %39 : vector<1x2x128xf32> to vector<2x128xf32>
    %41 = vector.shape_cast %38 : vector<2x128xf32> to vector<1x2x128xf32>
    tpu.vector_store %arg4[%c0_22, %c0_23, %c0_24], %41 {strides = array<i32>} : memref<1x2x128xf32, #tpu.memory_space<vmem>>, vector<1x2x128xf32>,
    return
  }
  func.func @transform_0(%arg0: i32, %arg1: i32) -> (i32, i32, i32) {
    %c0_i32 = arith.constant 0 : i32
    %c0_i32_0 = arith.constant 0 : i32
    %c0_i32_1 = arith.constant 0 : i32
    return %arg0, %c0_i32, %c0_i32_0 : i32, i32, i32
  }
  func.func @transform_1(%arg0: i32, %arg1: i32) -> (i32, i32, i32) {
    %c0_i32 = arith.constant 0 : i32
    %c0_i32_0 = arith.constant 0 : i32
    %c0_i32_1 = arith.constant 0 : i32
    %c0_i32_2 = arith.constant 0 : i32
    return %c0_i32, %c0_i32_0, %c0_i32_1 : i32, i32, i32
  }
  func.func @transform_2(%arg0: i32, %arg1: i32) -> (i32, i32, i32) {
    %c0_i32 = arith.constant 0 : i32
    %c0_i32_0 = arith.constant 0 : i32
    %c0_i32_1 = arith.constant 0 : i32
    return %arg0, %c0_i32, %c0_i32_0 : i32, i32, i32
  }
}

</mosaic_0001>

<llo_original>
// kernel: tpu_custom_call.1
$region0: #{tpu_custom_call.1}
  #allocation0 [shape = 'u32[]', space=smem, size = 0x4, offset = 0x4, fixed_abs, tag = 'smem constant byte address 0x4 - core index']
  #allocation1 [shape = 'u32[144,128]{1,0:T(1,128)}', space=vmem, size = 0x12000, scoped, tag = 'internal scratch']
  %s0 = inlined_call_operand.vmem [shape: f32[2,18,72], index: 0, kind: input, shape index: {}]
  %s1 = inlined_call_operand.hbm [shape: f32[3,72,128], index: 1, kind: input, shape index: {}]
  %s2 = inlined_call_operand.hbm [shape: f32[2,2,128], index: 2, kind: output, shape index: {}]
  %s3 = sld [smem:[#allocation0]]
  $region49: #{tpu_custom_call.1} parent=0
    _
  %s5 = ssub.s32 1, %s3
  %s6 = scalar_select 0, %s5, %s3
  $region1: #{tpu_custom_call.1} parent=0
    #allocation2 [shape = 'u8[110592]{0}', space=vmem, size = 0x1b000, scoped, tag = 'input window, operand 1, single buffered']
    #allocation3 [shape = 's32[2]{0}', space=sflag, size = 0x8, scoped, tag = 'scoped memory for tpu_custom_call.1']
    #allocation4 [shape = 's32[2]{0}', space=sflag, size = 0x8, scoped, tag = 'scoped memory for tpu_custom_call.1']
    #allocation5 [shape = 'u8[2048]{0}', space=vmem, size = 0x800, scoped, tag = 'output window, operand 0']
    %7 = vsyncpa [#allocation3], 0
    %8 = vsyncpa [#allocation4], 0
    %s9 = scalar_lea.sflag [#allocation4], 1
    %10 = vsyncpa %s9, 0
    loop: start=0, step=1, limit=4
    $region2: #{tpu_custom_call.1} parent=1 // loop_pre_header
      _
    $region3: #{tpu_custom_call.1} parent=1 // loop_header
      %s12 = sphi 0, %s16
      %p13 = scmp.ge.s32.totalorder %s12, 4
      %s19 = sphi 0, %s31
      %s20 = sphi 0, %s27
      %s21 = sphi 0, %s19
      %s22 = sphi 0, %s20
      %s23 = sphi 0, %s21
      %s24 = sphi 0, %s22
      %s34 = sphi 0, %s36
      %s37 = sphi 0, %s34
      %s38 = sphi 0, %s37
      %s54 = sphi 0, %s38
      %s58 = sphi 0, %s58
      %s60 = sphi 0, %s58
      %s61 = sphi 0, %s60
      %s75 = sphi 0, %s61
      %s81 = sphi 0, %s83
      %s84 = sphi 0, %s81
      %s85 = sphi 0, %s84
      %s101 = sphi 0, %s85
    $region4: #{tpu_custom_call.1} parent=1 // loop_header_branch
      %15 = sbr.rel (%p13) target = $region8
    $region5: #{tpu_custom_call.1} parent=1 // loop_body
      %s17 = ssub.s32 %s12, 1
      %s18 = ssub.s32 %s12, 2
      %s25 = sadd.s32 1, %s20
      %p26 = scmp.ge.s32.totalorder %s25, 1
      %s27 = scalar_select %p26, 0, %s25
      %s28 = sadd.s32 1, %s19
      %s29 = scalar_select %p26, %s28, %s19
      %p30 = scmp.ge.s32.totalorder %s29, 2
      %s31 = scalar_select %p30, 0, %s29
      %s32 = ssub.s32 %s19, %s31
      %p33 = scmp.eq.s32.totalorder %s32, 0
      %s35 = sadd.s32 %s34, 1
      %s36 = scalar_select %p33, %s34, %s35
      %p39 = pneg %p33
      %p40 = scmp.eq.s32.totalorder %s12, 1
      %p41 = por %p39, %p40
      %p42 = scmp.ne.s32.totalorder %s34, %s37
      %p43 = scmp.eq.s32.totalorder %s12, 0
      %p44 = por %p42, %p43
      %p45 = scmp.ne.s32.totalorder %s34, %s37
      %p46 = scmp.eq.s32.totalorder %s17, 1
      %p47 = por %p45, %p46
      %p48 = scmp.ne.s32.totalorder %s37, %s38
      %p49 = scmp.eq.s32.totalorder %s17, 0
      %p50 = por %p48, %p49
      %p51 = scmp.ne.s32.totalorder %s37, %s38
      %p52 = scmp.eq.s32.totalorder %s18, 1
      %p53 = por %p51, %p52
      %p55 = scmp.ne.s32.totalorder %s38, %s54
      %p56 = scmp.eq.s32.totalorder %s18, 0
      %p57 = por %p55, %p56
      %s59 = sadd.s32 %s58, 1
      %p62 = scmp.eq.s32.totalorder %s12, 1
      %p63 = scmp.ne.s32.totalorder %s58, %s60
      %p64 = scmp.eq.s32.totalorder %s12, 0
      %p65 = por %p63, %p64
      %p66 = scmp.ne.s32.totalorder %s58, %s60
      %p67 = scmp.eq.s32.totalorder %s17, 1
      %p68 = por %p66, %p67
      %p69 = scmp.ne.s32.totalorder %s60, %s61
      %p70 = scmp.eq.s32.totalorder %s17, 0
      %p71 = por %p69, %p70
      %p72 = scmp.ne.s32.totalorder %s60, %s61
      %p73 = scmp.eq.s32.totalorder %s18, 1
      %p74 = por %p72, %p73
      %p76 = scmp.ne.s32.totalorder %s61, %s75
      %p77 = scmp.eq.s32.totalorder %s18, 0
      %p78 = por %p76, %p77
      %s79 = ssub.s32 %s19, %s31
      %p80 = scmp.eq.s32.totalorder %s79, 0
      %s82 = sadd.s32 %s81, 1
      %s83 = scalar_select %p80, %s81, %s82
      %p86 = pneg %p80
      %p87 = scmp.eq.s32.totalorder %s12, 1
      %p88 = por %p86, %p87
      %p89 = scmp.ne.s32.totalorder %s81, %s84
      %p90 = scmp.eq.s32.totalorder %s12, 0
      %p91 = por %p89, %p90
      %p92 = scmp.ne.s32.totalorder %s81, %s84
      %p93 = scmp.eq.s32.totalorder %s17, 1
      %p94 = por %p92, %p93
      %p95 = scmp.ne.s32.totalorder %s84, %s85
      %p96 = scmp.eq.s32.totalorder %s17, 0
      %p97 = por %p95, %p96
      %p98 = scmp.ne.s32.totalorder %s84, %s85
      %p99 = scmp.eq.s32.totalorder %s18, 1
      %p100 = por %p98, %p99
      %p102 = scmp.ne.s32.totalorder %s85, %s101
      %p103 = scmp.eq.s32.totalorder %s18, 0
      %p104 = por %p102, %p103
      %p105 = scmp.le.s32.totalorder 1, %s12
      %p106 = scmp.lt.s32.totalorder %s12, 3
      %p107 = pnand %p105, %p106
      %p108 = pneg %p107
      // Predicated region
      $region9: #{tpu_custom_call.1} parent=5 // pred_check
        _
      $region10: #{tpu_custom_call.1} parent=5 // pred_check_branch
        %110 = sbr.rel (%p107) target = $region12
      $region11: #{tpu_custom_call.1} parent=5 // pred_region
        %s111 = ssub.s32 %s12, 1
        // Predicated region
        $region13: #{tpu_custom_call.1} parent=11 // pred_check
          %p112 = pneg %p71
        $region14: #{tpu_custom_call.1} parent=11 // pred_check_branch
          %114 = sbr.rel (%p112) target = $region16
        $region15: #{tpu_custom_call.1} parent=11 // pred_region
          %s116 = ssub.s32 3456, 3456
          %117 = vsyncadd [#allocation3], %s116
          %s118 = sshll.u32 [#allocation2], 4
          %s119 = int_to_ptr.vmem [resolvable:$true] %s118
          %124 = dma.hbm_to_vmem [thread:$0]  %s1, 3456, %s119, [#allocation3], 128, 128, 8
        $region16: #{tpu_custom_call.1} parent=11 // pred_fallthru
          _
      $region12: #{tpu_custom_call.1} parent=5 // pred_fallthru
        _
      %p125 = scmp.lt.s32.totalorder %s12, 2
      // Predicated region
      $region17: #{tpu_custom_call.1} parent=5 // pred_check
        %p126 = pneg %p125
      $region18: #{tpu_custom_call.1} parent=5 // pred_check_branch
        %128 = sbr.rel (%p126) target = $region20
      $region19: #{tpu_custom_call.1} parent=5 // pred_region
        // Predicated region
        $region21: #{tpu_custom_call.1} parent=19 // pred_check
          %p129 = pneg %p44
        $region22: #{tpu_custom_call.1} parent=19 // pred_check_branch
          %131 = sbr.rel (%p129) target = $region24
        $region23: #{tpu_custom_call.1} parent=19 // pred_region
          %p132 = scmp.lt.s32.totalorder %s19, 1
          %s133 = scalar_select %p132, %s19, 1
          %s134 = smul.addr %s133, 3
          %s135 = smul.addr %s134, 8
          %s136 = scalar_lea.vmem %s0, %s135
        $region24: #{tpu_custom_call.1} parent=19 // pred_fallthru
          _
      $region20: #{tpu_custom_call.1} parent=5 // pred_fallthru
        _
      %p137 = scmp.le.s32.totalorder 1, %s12
      %p138 = scmp.lt.s32.totalorder %s12, 3
      %p139 = pnand %p137, %p138
      %p140 = pneg %p139
      // Predicated region
      $region25: #{tpu_custom_call.1} parent=5 // pred_check
        _
      $region26: #{tpu_custom_call.1} parent=5 // pred_check_branch
        %142 = sbr.rel (%p139) target = $region28
      $region27: #{tpu_custom_call.1} parent=5 // pred_region
        %s143 = ssub.s32 %s12, 1
        // Predicated region
        $region29: #{tpu_custom_call.1} parent=27 // pred_check
          %p144 = pneg %p71
        $region30: #{tpu_custom_call.1} parent=27 // pred_check_branch
          %146 = sbr.rel (%p144) target = $region32
        $region31: #{tpu_custom_call.1} parent=27 // pred_region
          %147 = dma.done [#allocation3], 3456
        $region32: #{tpu_custom_call.1} parent=27 // pred_fallthru
          _
        %p148 = scmp.lt.s32.totalorder %s21, 1
        %s149 = scalar_select %p148, %s21, 1
        %s150 = smul.addr %s149, 3
        %s151 = smul.addr %s150, 8
        %s152 = scalar_lea.vmem %s0, %s151
        %p153 = pneg %p50
        %p154 = pneg %p47
        %p155 = pneg %p71
        %p156 = pneg %p68
        %p157 = pneg %p97
        %p158 = pneg %p94
        %s159 = sand.u32 %s84, 1
        %s160 = scalar_lea.sflag [#allocation4], %s159
        %s161 = sand.u32 %s84, 1
        %s162 = smul.addr %s161, 2
        %s163 = scalar_lea.vmem [#allocation5], %s162
        %p164 = scmp.lt.s32.totalorder %s21, 1
        %s165 = scalar_select %p164, %s21, 1
        %s166 = smul.addr %s165, 3
        %s167 = smul.addr %s166, 8
        %s168 = scalar_lea.vmem %s0, %s167
        %s169 = smul.u32 %s22, 16
        %s170 = scalar_lea.vmem %s168, %s169
        %v171 = vld [vmem:[%s170] sm:$0xff]
        %v172 = vld [vmem:[%s170 + $0x8] sm:$0xff]
        %v173 = vld [vmem:[#allocation2] sm:$0xff]
        %v174 = vld [vmem:[#allocation2 + $0x8] sm:$0xff]
        %v175 = vld [vmem:[#allocation2 + $0x10] sm:$0xff]
        %v176 = vld [vmem:[#allocation2 + $0x18] sm:$0xff]
        %v177 = vld [vmem:[#allocation2 + $0x20] sm:$0xff]
        %v178 = vld [vmem:[#allocation2 + $0x28] sm:$0xff]
        %v179 = vld [vmem:[#allocation2 + $0x30] sm:$0xff]
        %v180 = vld [vmem:[#allocation2 + $0x38] sm:$0xff]
        %v181 = vld [vmem:[#allocation2 + $0x40] sm:$0xff]
        %s182 = sadd.s32 %s169, 1
        %s183 = scalar_lea.vmem %s168, %s182
        %v184 = vld [vmem:[%s183] sm:$0xff]
        %v185 = vld [vmem:[%s183 + $0x8] sm:$0xff]
        %s186 = scalar_lea.vmem [#allocation2], 72
        %v187 = vld [vmem:[%s186] sm:$0xff]
        %v188 = vld [vmem:[%s186 + $0x8] sm:$0xff]
        %v189 = vld [vmem:[%s186 + $0x10] sm:$0xff]
        %v190 = vld [vmem:[%s186 + $0x18] sm:$0xff]
        %v191 = vld [vmem:[%s186 + $0x20] sm:$0xff]
        %v192 = vld [vmem:[%s186 + $0x28] sm:$0xff]
        %v193 = vld [vmem:[%s186 + $0x30] sm:$0xff]
        %v194 = vld [vmem:[%s186 + $0x38] sm:$0xff]
        %v195 = vld [vmem:[%s186 + $0x40] sm:$0xff]
        %vm196 = vcmask 588800
        %v198 = vsel %vm196, %v184, 0
        %v201 = vsel %vm196, %v185, 0
        %203 = vmatprep.subr.mxu0 0.0
        %204 = vmatpush1.msra.mxu0 %v187
        %205 = vmatprep.subr.mxu0 0.0
        %206 = vmatpush1.msra.mxu0 %v188
        %207 = vmatprep.subr.mxu0 0.0
        %208 = vmatpush1.msra.mxu0 %v189
        %209 = vmatprep.subr.mxu0 0.0
        %210 = vmatpush1.msra.mxu0 %v190
        %211 = vmatprep.subr.mxu0 0.0
        %212 = vmatpush1.msra.mxu0 %v191
        %213 = vmatprep.subr.mxu0 0.0
        %214 = vmatpush1.msra.mxu0 %v192
        %215 = vmatprep.subr.mxu0 0.0
        %216 = vmatpush1.msra.mxu0 %v193
        %217 = vmatprep.subr.mxu0 0.0
        %218 = vmatpush1.msra.mxu0 %v194
        %219 = vmatprep.subr.mxu0 0.0
        %220 = vmatpush1.msra.mxu0 %v195
        %221 = vmatprep.subr.mxu0 0.0
        %222 = vmatpush1.msra.mxu0 0.0
        %223 = vmatprep.subr.mxu0 0.0
        %224 = vmatpush1.msra.mxu0 0.0
        %225 = vmatprep.subr.mxu0 0.0
        %226 = vmatpush1.msra.mxu0 0.0
        %227 = vmatprep.subr.mxu0 0.0
        %228 = vmatpush1.msra.mxu0 0.0
        %229 = vmatprep.subr.mxu0 0.0
        %230 = vmatpush1.msra.mxu0 0.0
        %231 = vmatprep.subr.mxu0 0.0
        %232 = vmatpush1.msra.mxu0 0.0
        %233 = vmatprep.subr.mxu0 0.0
        %234 = vmatpush1.msra.mxu0 0.0
        %235 = vmatprep.subr.mxu0 0.0
        %236 = vmatpush1.msra.mxu0 0.0
        %237 = vmatprep.subr.mxu0 0.0
        %238 = vmatpush1.msra.mxu0 0.0
        %239 = vmatprep.subr.mxu0 0.0
        %240 = vmatpush1.msra.mxu0 0.0
        %241 = vmatprep.subr.mxu0 0.0
        %242 = vmatpush1.msra.mxu0 0.0
        %243 = vmatprep.subr.mxu0 0.0
        %244 = vmatpush1.msra.mxu0 0.0
        %245 = vmatprep.subr.mxu0 0.0
        %246 = vmatpush1.msra.mxu0 0.0
        %247 = vmatprep.subr.mxu0 0.0
        %248 = vmatpush1.msra.mxu0 0.0
        %249 = vmatprep.subr.mxu0 0.0
        %250 = vmatpush1.msra.mxu0 0.0
        %251 = vmatprep.subr.mxu0 0.0
        %252 = vmatpush1.msra.mxu0 0.0
        %253 = vmatprep.subr.mxu0 0.0
        %254 = vmatpush1.msra.mxu0 0.0
        %255 = vmatprep.subr.mxu0 0.0
        %256 = vmatpush1.msra.mxu0 0.0
        %257 = vmatprep.subr.mxu0 0.0
        %258 = vmatpush1.msra.mxu0 0.0
        %259 = vmatprep.subr.mxu0 0.0
        %260 = vmatpush1.msra.mxu0 0.0
        %261 = vmatprep.subr.mxu0 0.0
        %262 = vmatpush1.msra.mxu0 0.0
        %263 = vmatprep.subr.mxu0 0.0
        %264 = vmatpush1.msra.mxu0 0.0
        %265 = vmatprep.subr.mxu0 0.0
        %266 = vmatpush1.msra.mxu0 0.0
        %267 = vmatprep.mubr.f32.mxu0 0.0
        %268 = vmatmul.mubr.f32.gmra.mrb[0].mxu0 %v198
        %v269 = vpop.f32.mrb[0].mxu0
        %v270 = vadd.f32 0.0, %v269
        %v271 = vpop.f32.mrb[0].mxu0
        %272 = vmatprep.mubr.f32.mxu0 0.0
        %273 = vmatmul.mubr.f32.gmra.mrb[0].mxu0 %v201
        %v274 = vpop.f32.mrb[0].mxu0
        %v275 = vadd.f32 0.0, %v274
        %v276 = vpop.f32.mrb[0].mxu0
        %277 = vdwg.mxu0
        %v279 = vsel %vm196, %v171, 0
        %v282 = vsel %vm196, %v172, 0
        %284 = vmatprep.subr.mxu0 0.0
        %285 = vmatpush1.msra.mxu0 %v173
        %286 = vmatprep.subr.mxu0 0.0
        %287 = vmatpush1.msra.mxu0 %v174
        %288 = vmatprep.subr.mxu0 0.0
        %289 = vmatpush1.msra.mxu0 %v175
        %290 = vmatprep.subr.mxu0 0.0
        %291 = vmatpush1.msra.mxu0 %v176
        %292 = vmatprep.subr.mxu0 0.0
        %293 = vmatpush1.msra.mxu0 %v177
        %294 = vmatprep.subr.mxu0 0.0
        %295 = vmatpush1.msra.mxu0 %v178
        %296 = vmatprep.subr.mxu0 0.0
        %297 = vmatpush1.msra.mxu0 %v179
        %298 = vmatprep.subr.mxu0 0.0
        %299 = vmatpush1.msra.mxu0 %v180
        %300 = vmatprep.subr.mxu0 0.0
        %301 = vmatpush1.msra.mxu0 %v181
        %302 = vmatprep.subr.mxu0 0.0
        %303 = vmatpush1.msra.mxu0 0.0
        %304 = vmatprep.subr.mxu0 0.0
        %305 = vmatpush1.msra.mxu0 0.0
        %306 = vmatprep.subr.mxu0 0.0
        %307 = vmatpush1.msra.mxu0 0.0
        %308 = vmatprep.subr.mxu0 0.0
        %309 = vmatpush1.msra.mxu0 0.0
        %310 = vmatprep.subr.mxu0 0.0
        %311 = vmatpush1.msra.mxu0 0.0
        %312 = vmatprep.subr.mxu0 0.0
        %313 = vmatpush1.msra.mxu0 0.0
        %314 = vmatprep.subr.mxu0 0.0
        %315 = vmatpush1.msra.mxu0 0.0
        %316 = vmatprep.subr.mxu0 0.0
        %317 = vmatpush1.msra.mxu0 0.0
        %318 = vmatprep.subr.mxu0 0.0
        %319 = vmatpush1.msra.mxu0 0.0
        %320 = vmatprep.subr.mxu0 0.0
        %321 = vmatpush1.msra.mxu0 0.0
        %322 = vmatprep.subr.mxu0 0.0
        %323 = vmatpush1.msra.mxu0 0.0
        %324 = vmatprep.subr.mxu0 0.0
        %325 = vmatpush1.msra.mxu0 0.0
        %326 = vmatprep.subr.mxu0 0.0
        %327 = vmatpush1.msra.mxu0 0.0
        %328 = vmatprep.subr.mxu0 0.0
        %329 = vmatpush1.msra.mxu0 0.0
        %330 = vmatprep.subr.mxu0 0.0
        %331 = vmatpush1.msra.mxu0 0.0
        %332 = vmatprep.subr.mxu0 0.0
        %333 = vmatpush1.msra.mxu0 0.0
        %334 = vmatprep.subr.mxu0 0.0
        %335 = vmatpush1.msra.mxu0 0.0
        %336 = vmatprep.subr.mxu0 0.0
        %337 = vmatpush1.msra.mxu0 0.0
        %338 = vmatprep.subr.mxu0 0.0
        %339 = vmatpush1.msra.mxu0 0.0
        %340 = vmatprep.subr.mxu0 0.0
        %341 = vmatpush1.msra.mxu0 0.0
        %342 = vmatprep.subr.mxu0 0.0
        %343 = vmatpush1.msra.mxu0 0.0
        %344 = vmatprep.subr.mxu0 0.0
        %345 = vmatpush1.msra.mxu0 0.0
        %346 = vmatprep.subr.mxu0 0.0
        %347 = vmatpush1.msra.mxu0 0.0
        %348 = vmatprep.mubr.f32.mxu0 0.0
        %349 = vmatmul.mubr.f32.gmra.mrb[0].mxu0 %v279
        %v350 = vpop.f32.mrb[0].mxu0
        %v351 = vadd.f32 %v270, %v350
        %v352 = vpop.f32.mrb[0].mxu0
        %353 = vmatprep.mubr.f32.mxu0 0.0
        %354 = vmatmul.mubr.f32.gmra.mrb[0].mxu0 %v282
        %v355 = vpop.f32.mrb[0].mxu0
        %v356 = vadd.f32 %v275, %v355
        %v357 = vpop.f32.mrb[0].mxu0
        %358 = vdwg.mxu0
        %s359 = sadd.s32 %s169, 2
        %s360 = scalar_lea.vmem %s168, %s359
        %v361 = vld [vmem:[%s360] sm:$0xff]
        %v362 = vld [vmem:[%s360 + $0x8] sm:$0xff]
        %s363 = scalar_lea.vmem [#allocation2], 144
        %v364 = vld [vmem:[%s363] sm:$0xff]
        %v365 = vld [vmem:[%s363 + $0x8] sm:$0xff]
        %v366 = vld [vmem:[%s363 + $0x10] sm:$0xff]
        %v367 = vld [vmem:[%s363 + $0x18] sm:$0xff]
        %v368 = vld [vmem:[%s363 + $0x20] sm:$0xff]
        %v369 = vld [vmem:[%s363 + $0x28] sm:$0xff]
        %v370 = vld [vmem:[%s363 + $0x30] sm:$0xff]
        %v371 = vld [vmem:[%s363 + $0x38] sm:$0xff]
        %v372 = vld [vmem:[%s363 + $0x40] sm:$0xff]
        %v374 = vsel %vm196, %v361, 0
        %v377 = vsel %vm196, %v362, 0
        %379 = vmatprep.subr.mxu0 0.0
        %380 = vmatpush1.msra.mxu0 %v364
        %381 = vmatprep.subr.mxu0 0.0
        %382 = vmatpush1.msra.mxu0 %v365
        %383 = vmatprep.subr.mxu0 0.0
        %384 = vmatpush1.msra.mxu0 %v366
        %385 = vmatprep.subr.mxu0 0.0
        %386 = vmatpush1.msra.mxu0 %v367
        %387 = vmatprep.subr.mxu0 0.0
        %388 = vmatpush1.msra.mxu0 %v368
        %389 = vmatprep.subr.mxu0 0.0
        %390 = vmatpush1.msra.mxu0 %v369
        %391 = vmatprep.subr.mxu0 0.0
        %392 = vmatpush1.msra.mxu0 %v370
        %393 = vmatprep.subr.mxu0 0.0
        %394 = vmatpush1.msra.mxu0 %v371
        %395 = vmatprep.subr.mxu0 0.0
        %396 = vmatpush1.msra.mxu0 %v372
        %397 = vmatprep.subr.mxu0 0.0
        %398 = vmatpush1.msra.mxu0 0.0
        %399 = vmatprep.subr.mxu0 0.0
        %400 = vmatpush1.msra.mxu0 0.0
        %401 = vmatprep.subr.mxu0 0.0
        %402 = vmatpush1.msra.mxu0 0.0
        %403 = vmatprep.subr.mxu0 0.0
        %404 = vmatpush1.msra.mxu0 0.0
        %405 = vmatprep.subr.mxu0 0.0
        %406 = vmatpush1.msra.mxu0 0.0
        %407 = vmatprep.subr.mxu0 0.0
        %408 = vmatpush1.msra.mxu0 0.0
        %409 = vmatprep.subr.mxu0 0.0
        %410 = vmatpush1.msra.mxu0 0.0
        %411 = vmatprep.subr.mxu0 0.0
        %412 = vmatpush1.msra.mxu0 0.0
        %413 = vmatprep.subr.mxu0 0.0
        %414 = vmatpush1.msra.mxu0 0.0
        %415 = vmatprep.subr.mxu0 0.0
        %416 = vmatpush1.msra.mxu0 0.0
        %417 = vmatprep.subr.mxu0 0.0
        %418 = vmatpush1.msra.mxu0 0.0
        %419 = vmatprep.subr.mxu0 0.0
        %420 = vmatpush1.msra.mxu0 0.0
        %421 = vmatprep.subr.mxu0 0.0
        %422 = vmatpush1.msra.mxu0 0.0
        %423 = vmatprep.subr.mxu0 0.0
        %424 = vmatpush1.msra.mxu0 0.0
        %425 = vmatprep.subr.mxu0 0.0
        %426 = vmatpush1.msra.mxu0 0.0
        %427 = vmatprep.subr.mxu0 0.0
        %428 = vmatpush1.msra.mxu0 0.0
        %429 = vmatprep.subr.mxu0 0.0
        %430 = vmatpush1.msra.mxu0 0.0
        %431 = vmatprep.subr.mxu0 0.0
        %432 = vmatpush1.msra.mxu0 0.0
        %433 = vmatprep.subr.mxu0 0.0
        %434 = vmatpush1.msra.mxu0 0.0
        %435 = vmatprep.subr.mxu0 0.0
        %436 = vmatpush1.msra.mxu0 0.0
        %437 = vmatprep.subr.mxu0 0.0
        %438 = vmatpush1.msra.mxu0 0.0
        %439 = vmatprep.subr.mxu0 0.0
        %440 = vmatpush1.msra.mxu0 0.0
        %441 = vmatprep.subr.mxu0 0.0
        %442 = vmatpush1.msra.mxu0 0.0
        %443 = vmatprep.mubr.f32.mxu0 0.0
        %444 = vmatmul.mubr.f32.gmra.mrb[0].mxu0 %v374
        %v445 = vpop.f32.mrb[0].mxu0
        %v446 = vadd.f32 0.0, %v445
        %v447 = vpop.f32.mrb[0].mxu0
        %448 = vmatprep.mubr.f32.mxu0 0.0
        %449 = vmatmul.mubr.f32.gmra.mrb[0].mxu0 %v377
        %v450 = vpop.f32.mrb[0].mxu0
        %v451 = vadd.f32 0.0, %v450
        %v452 = vpop.f32.mrb[0].mxu0
        %453 = vdwg.mxu0
        %v454 = vadd.f32 %v351, %v446
        %v455 = vadd.f32 %v356, %v451
        %v456 = vadd.f32 %v454, %v455
        %v457 = vrot.slane %v456, 4
        %v458 = vadd.f32 %v456, %v457
        %v459 = vrot.slane %v458, 2
        %v460 = vadd.f32 %v458, %v459
        %v461 = vrot.slane %v460, 1
        %v462 = vadd.f32 %v460, %v461
        %v463 = vmul.f32 %v454, %v454
        %v464 = vmul.f32 %v455, %v455
        %v465 = vadd.f32 %v463, %v464
        %v466 = vrot.slane %v465, 4
        %v467 = vadd.f32 %v465, %v466
        %v468 = vrot.slane %v467, 2
        %v469 = vadd.f32 %v467, %v468
        %v470 = vrot.slane %v469, 1
        %v471 = vadd.f32 %v469, %v470
        %vm472 = vcmask 1040384
        %v473 = vsel %vm472, %v462, %v471
        %p474 = scmp.eq.s32.totalorder %s22, 0
        // Predicated region
        $region33: #{tpu_custom_call.1} parent=27 // pred_check
          %p475 = pneg %p474
        $region34: #{tpu_custom_call.1} parent=27 // pred_check_branch
          %477 = sbr.rel (%p475) target = $region36
        $region35: #{tpu_custom_call.1} parent=27 // pred_region
          %478 = vst [vmem:[%s163] sm:$0x3] 0.0
        $region36: #{tpu_custom_call.1} parent=27 // pred_fallthru
          _
        %v479 = vld [vmem:[%s163] sm:$0x3]
        %v480 = vadd.f32 %v479, %v473
        %481 = vst [vmem:[%s163] sm:$0x3] %v480
        %s482 = sand.u32 %s84, 1
        %s483 = scalar_lea.sflag [#allocation4], %s482
        %s484 = sand.u32 %s84, 1
        %s485 = smul.addr %s484, 2
        %s486 = scalar_lea.vmem [#allocation5], %s485
        // Predicated region
        $region37: #{tpu_custom_call.1} parent=27 // pred_check
          %p487 = pneg %p94
        $region38: #{tpu_custom_call.1} parent=27 // pred_check_branch
          %489 = sbr.rel (%p487) target = $region40
        $region39: #{tpu_custom_call.1} parent=27 // pred_region
          %s491 = ssub.s32 32, 32
          %492 = vsyncadd %s483, %s491
          %s493 = smul.addr %s21, 32
          %s494 = scalar_lea.hbm %s2, %s493
          %s496 = sshll.u32 %s486, 4
          %s497 = int_to_ptr.vmem [resolvable:$true] %s496
          %499 = dma.vmem_to_hbm [thread:$0]  %s497, 32, %s494, %s483
        $region40: #{tpu_custom_call.1} parent=27 // pred_fallthru
          _
      $region28: #{tpu_custom_call.1} parent=5 // pred_fallthru
        _
      %p500 = scmp.le.s32.totalorder 2, %s12
      // Predicated region
      $region41: #{tpu_custom_call.1} parent=5 // pred_check
        %p501 = pneg %p500
      $region42: #{tpu_custom_call.1} parent=5 // pred_check_branch
        %503 = sbr.rel (%p501) target = $region44
      $region43: #{tpu_custom_call.1} parent=5 // pred_region
        %s504 = ssub.s32 %s12, 2
        // Predicated region
        $region45: #{tpu_custom_call.1} parent=43 // pred_check
          %p505 = pneg %p100
        $region46: #{tpu_custom_call.1} parent=43 // pred_check_branch
          %507 = sbr.rel (%p505) target = $region48
        $region47: #{tpu_custom_call.1} parent=43 // pred_region
          %s508 = sand.u32 %s85, 1
          %s509 = scalar_lea.sflag [#allocation4], %s508
          %s510 = sand.u32 %s85, 1
          %s511 = smul.addr %s510, 2
          %s512 = scalar_lea.vmem [#allocation5], %s511
          %513 = dma.done %s509, 32
        $region48: #{tpu_custom_call.1} parent=43 // pred_fallthru
          _
      $region44: #{tpu_custom_call.1} parent=5 // pred_fallthru
        _
    $region6: #{tpu_custom_call.1} parent=1 // loop_footer
      %s16 = sadd.s32 1, %s12
    $region7: #{tpu_custom_call.1} parent=1 // loop_footer_branch
      %11 = sbr.rel target = $region3
    $region8: #{tpu_custom_call.1} parent=1 // loop_exit
      _
    %514 = vsyncpa [#allocation3], 1
    %s515 = scalar_lea.sflag [#allocation3], 1
    %516 = vsyncpa %s515, 1
    %517 = vsyncpa [#allocation4], 1
    %s518 = scalar_lea.sflag [#allocation4], 1
    %519 = vsyncpa %s518, 1

</llo_original>
